<compile_context>
chip_gen: v6e
topology: v6e:2x2x1
jax: 0.10.0
libtpu: 0.0.40
codegen_flags: <defaults>
</compile_context>

<pallas_src>
import functools

import jax
import jax.numpy as jnp
from jax.experimental import pallas as pl
from jax.experimental.pallas import tpu as pltpu


def _round_up(n, m):
    return ((n + m - 1) // m) * m


def fused_gin_stack_kernel(a_ref, x_ref, w1_ref, b1_ref, w2_ref, b2_ref,
                           gamma_ref, beta_ref, p_ref,
                           gout_ref,
                           z_scr, h2_scr, sum_scr, sumsq_scr,
                           *, n_valid, tm):
    """One grid step = (layer l, dst-row strip i)."""
    l = pl.program_id(0)
    i = pl.program_id(1)
    n_strips = pl.num_programs(1)
    np_pad = z_scr.shape[0]

    # Layer 0, strip 0: seed the resident node features from the padded input.
    @pl.when((l == 0) & (i == 0))
    def _():
        z_scr[...] = x_ref[...]

    # Start of every layer: reset the BatchNorm accumulators.
    @pl.when(i == 0)
    def _():
        sum_scr[...] = jnp.zeros_like(sum_scr)
        sumsq_scr[...] = jnp.zeros_like(sumsq_scr)

    row0 = pl.multiple_of(i * tm, tm)
    z_full = z_scr[...]                       # [Np, Hp] fp32 (resident)
    z_strip = z_scr[pl.ds(row0, tm), :]       # [tm, Hp] fp32

    # GIN aggregation for this dst-row strip: A[rows, :] @ z + (1+eps)*z[rows],
    # eps = 0.  A is bf16 (exact integer counts), z cast to bf16 feeds the MXU
    # at bf16 rate; accumulation stays fp32.
    h = jnp.dot(a_ref[...], z_full.astype(jnp.bfloat16),
                preferred_element_type=jnp.float32) + z_strip

    # GIN MLP: Linear -> ReLU -> Linear, then the outer activation (ReLU).
    h1 = jnp.dot(h, w1_ref[0], preferred_element_type=jnp.float32) + b1_ref[0]
    h1 = jnp.maximum(h1, 0.0)
    h2 = jnp.dot(h1, w2_ref[0], preferred_element_type=jnp.float32) + b2_ref[0]
    h2 = jnp.maximum(h2, 0.0)

    # Zero padded node rows so they do not pollute BN statistics (A / P columns
    # for padded nodes are already zero, so they never feed valid nodes).
    if n_valid < np_pad:
        rows = jax.lax.broadcasted_iota(jnp.int32, h2.shape, 0) + row0
        h2 = jnp.where(rows < n_valid, h2, 0.0)

    # One-pass BN statistics: running sum / sum-of-squares over node rows.
    sum_scr[...] += jnp.sum(h2, axis=0, keepdims=True)
    sumsq_scr[...] += jnp.sum(h2 * h2, axis=0, keepdims=True)
    h2_scr[pl.ds(row0, tm), :] = h2

    # Last strip of the layer: finalize BN over ALL nodes (training-mode batch
    # stats, biased variance, eps=1e-5), write the new resident z, and do the
    # global mean pool for this layer.
    @pl.when(i == n_strips - 1)
    def _():
        inv_n = 1.0 / float(n_valid)
        mean = sum_scr[...] * inv_n
        var = jnp.maximum(sumsq_scr[...] * inv_n - mean * mean, 0.0)
        inv_std = jax.lax.rsqrt(var + 1e-5)
        scale = gamma_ref[...] * inv_std
        shift = beta_ref[...] - mean * scale
        zn = h2_scr[...] * scale + shift                 # BatchNorm1d (train)
        z_scr[...] = zn                                   # next layer's input
        gout_ref[0] = jnp.dot(p_ref[...], zn,             # global mean pool
                              preferred_element_type=jnp.float32)


def gcn_forward(x, edge_index, batch, layer_params, gamma, beta, num_graphs):
    """x: [N, input_dim] f32, edge_index: [2, E] int32, batch: [N] int32."""
    N, input_dim = x.shape
    L = len(layer_params)
    H = layer_params[0][2].shape[0]          # w2 is [H, H]
    G = num_graphs

    # ---- Plain-JAX glue: dense adjacency + mean-pool matrix. ----
    # TODO(synk): for realistically sparse graphs, replace dense A with a
    # block-sparse neighbor-list formulation (scalar-prefetch indexed tiles).
    src, dst = edge_index[0], edge_index[1]
    A = jnp.zeros((N, N), jnp.float32).at[dst, src].add(1.0)
    onehot = (batch[None, :] == jnp.arange(G)[:, None]).astype(jnp.float32)
    counts = jnp.maximum(onehot.sum(axis=1, keepdims=True), 1.0)
    P = onehot / counts

    # ---- Pad to TPU-friendly shapes. ----
    Hp = _round_up(max(H, input_dim), 128)   # lane-dense feature dim
    tm = 256 if N > 256 else 16              # dst-row strip height (bf16-tile aligned)
    Np = _round_up(N, tm)

    A_p = jnp.zeros((Np, Np), jnp.bfloat16).at[:N, :N].set(A.astype(jnp.bfloat16))
    x_p = jnp.zeros((Np, Hp), jnp.float32).at[:N, :input_dim].set(x)
    P_p = jnp.zeros((G, Np), jnp.float32).at[:, :N].set(P)

    def pad_w(w):
        return jnp.zeros((Hp, Hp), jnp.float32).at[:w.shape[0], :w.shape[1]].set(w)

    def pad_v(v):
        return jnp.zeros((1, Hp), jnp.float32).at[0, :v.shape[0]].set(v)

    w1 = jnp.stack([pad_w(p[0]) for p in layer_params])    # [L, Hp, Hp]
    b1 = jnp.stack([pad_v(p[1]) for p in layer_params])    # [L, 1, Hp]
    w2 = jnp.stack([pad_w(p[2]) for p in layer_params])    # [L, Hp, Hp]
    b2 = jnp.stack([pad_v(p[3]) for p in layer_params])    # [L, 1, Hp]
    gamma_p = pad_v(gamma)                                  # shared BN (matches spec)
    beta_p = pad_v(beta)

    n_strips = Np // tm
    kernel = functools.partial(fused_gin_stack_kernel, n_valid=N, tm=tm)

    # Rough VMEM footprint; only raise the scoped limit when needed and stay
    # well under v7x's 64 MiB physical VMEM.
    est_vmem = (2 * tm * Np * 2              # A strips (bf16, double-buffered)
                + 3 * Np * Hp * 4            # z scratch, h2 scratch, resident x
                + G * Np * 4                 # P
                + 4 * Hp * Hp * 4            # W1/W2 (double-buffered)
                + 16 * Hp * 4                # biases / gamma / beta / BN accums
                + 2 * G * Hp * 4)            # pooled output block
    cp = dict(dimension_semantics=("arbitrary", "arbitrary"))
    if est_vmem > 24 * 1024 * 1024:
        cp["vmem_limit_bytes"] = min(est_vmem + (8 << 20), 48 << 20)

    gout = pl.pallas_call(
        kernel,
        out_shape=jax.ShapeDtypeStruct((L, G, Hp), jnp.float32),
        grid_spec=pltpu.PrefetchScalarGridSpec(
            num_scalar_prefetch=0,
            grid=(L, n_strips),
            in_specs=[
                pl.BlockSpec((tm, Np), lambda l, i: (i, 0)),        # A row strip
                pl.BlockSpec((Np, Hp), lambda l, i: (0, 0)),        # x (resident)
                pl.BlockSpec((1, Hp, Hp), lambda l, i: (l, 0, 0)),  # W1[l]
                pl.BlockSpec((1, 1, Hp), lambda l, i: (l, 0, 0)),   # b1[l]
                pl.BlockSpec((1, Hp, Hp), lambda l, i: (l, 0, 0)),  # W2[l]
                pl.BlockSpec((1, 1, Hp), lambda l, i: (l, 0, 0)),   # b2[l]
                pl.BlockSpec((1, Hp), lambda l, i: (0, 0)),         # gamma
                pl.BlockSpec((1, Hp), lambda l, i: (0, 0)),         # beta
                pl.BlockSpec((G, Np), lambda l, i: (0, 0)),         # P (resident)
            ],
            out_specs=pl.BlockSpec((1, G, Hp), lambda l, i: (l, 0, 0)),
            scratch_shapes=[
                pltpu.VMEM((Np, Hp), jnp.float32),   # resident node features z
                pltpu.VMEM((Np, Hp), jnp.float32),   # current layer's pre-BN h2
                pltpu.VMEM((1, Hp), jnp.float32),    # BN sum
                pltpu.VMEM((1, Hp), jnp.float32),    # BN sum of squares
            ],
        ),
        compiler_params=pltpu.CompilerParams(**cp),
    )(A_p, x_p, w1, b1, w2, b2, gamma_p, beta_p, P_p)

    g = gout[:, :, :H]                                   # [L, G, H]
    return jnp.transpose(g, (1, 0, 2)).reshape(G, L * H)  # torch.cat(g, dim=1)


def gcn_forward_ref(x, edge_index, batch, layer_params, gamma, beta, num_graphs):
    """Plain-JAX reference (same bf16 aggregation matmul as the kernel)."""
    N = x.shape[0]
    src, dst = edge_index[0], edge_index[1]
    A = jnp.zeros((N, N), jnp.float32).at[dst, src].add(1.0)
    onehot = (batch[None, :] == jnp.arange(num_graphs)[:, None]).astype(jnp.float32)
    counts = jnp.maximum(onehot.sum(axis=1, keepdims=True), 1.0)
    P = onehot / counts

    hi = jax.lax.Precision.HIGHEST
    a_bf = A.astype(jnp.bfloat16)
    z = x
    outs = []
    for (w1, b1, w2, b2) in layer_params:
        h = jnp.dot(a_bf, z.astype(jnp.bfloat16),
                    preferred_element_type=jnp.float32) + z
        h1 = jnp.maximum(jnp.dot(h, w1, precision=hi) + b1[None, :], 0.0)
        h2 = jnp.maximum(jnp.dot(h1, w2, precision=hi) + b2[None, :], 0.0)
        mean = jnp.mean(h2, axis=0, keepdims=True)
        var = jnp.mean((h2 - mean) ** 2, axis=0, keepdims=True)
        zn = (h2 - mean) * jax.lax.rsqrt(var + 1e-5) * gamma[None, :] + beta[None, :]
        z = zn
        outs.append(jnp.dot(P, zn, precision=hi))
    return jnp.concatenate(outs, axis=1)


def init_params(key, input_dim, hidden_dim, num_gc_layers):
    layers = []
    for i in range(num_gc_layers):
        din = input_dim if i == 0 else hidden_dim
        key, k1, k2, k3, k4 = jax.random.split(key, 5)
        w1 = jax.random.normal(k1, (din, hidden_dim), jnp.float32) * 0.1
        b1 = jax.random.normal(k2, (hidden_dim,), jnp.float32) * 0.1
        w2 = jax.random.normal(k3, (hidden_dim, hidden_dim), jnp.float32) * 0.1
        b2 = jax.random.normal(k4, (hidden_dim,), jnp.float32) * 0.1
        layers.append((w1, b1, w2, b2))
    # One shared BatchNorm1d (the PyTorch ModuleList repeats the same module);
    # training-mode batch stats -> identical forward whether shared or not.
    gamma = jnp.ones((hidden_dim,), jnp.float32)
    beta = jnp.zeros((hidden_dim,), jnp.float32)
    return layers, gamma, beta


if __name__ == "__main__":
    input_dim, hidden_dim, num_gc_layers = 4, 32, 3
    num_graphs, nodes_per_graph = 2, 12
    N = num_graphs * nodes_per_graph          # 24 nodes -> 2 row strips + padding

    key = jax.random.PRNGKey(0)
    key, kx = jax.random.split(key)
    x = jax.random.normal(kx, (N, input_dim), jnp.float32)

    # Bidirectional ring graph within each of the 2 graphs.
    srcs, dsts = [], []
    for g_id in range(num_graphs):
        base = g_id * nodes_per_graph
        for n in range(nodes_per_graph):
            a = base + n
            b = base + (n + 1) % nodes_per_graph
            srcs += [a, b]
            dsts += [b, a]
    edge_index = jnp.array([srcs, dsts], dtype=jnp.int32)
    batch = jnp.repeat(jnp.arange(num_graphs, dtype=jnp.int32), nodes_per_graph)

    layer_params, gamma, beta = init_params(key, input_dim, hidden_dim, num_gc_layers)

    out = gcn_forward(x, edge_index, batch, layer_params, gamma, beta, num_graphs)
    out = jax.block_until_ready(out)

    ref = gcn_forward_ref(x, edge_index, batch, layer_params, gamma, beta, num_graphs)
    ref = jax.block_until_ready(ref)

    assert out.shape == (num_graphs, hidden_dim * num_gc_layers)
    max_err = float(jnp.max(jnp.abs(out - ref)))
    assert max_err < 5e-2, f"kernel vs reference max abs err {max_err}"
    print("KERNEL_OK")
</pallas_src>

<mosaic_0001>
module attributes {stable_mosaic.version = 11 : i64} {
  func.func @fused_gin_stack_kernel(%arg0: i32, %arg1: i32, %arg2: memref<16x32xbf16, #tpu.memory_space<vmem>>, %arg3: memref<32x128xf32, #tpu.memory_space<vmem>>, %arg4: memref<1x128x128xf32, #tpu.memory_space<vmem>>, %arg5: memref<1x1x128xf32, #tpu.memory_space<vmem>>, %arg6: memref<1x128x128xf32, #tpu.memory_space<vmem>>, %arg7: memref<1x1x128xf32, #tpu.memory_space<vmem>>, %arg8: memref<1x128xf32, #tpu.memory_space<vmem>>, %arg9: memref<1x128xf32, #tpu.memory_space<vmem>>, %arg10: memref<2x32xf32, #tpu.memory_space<vmem>>, %arg11: memref<1x2x128xf32, #tpu.memory_space<vmem>>, %arg12: memref<32x128xf32, #tpu.memory_space<vmem>>, %arg13: memref<32x128xf32, #tpu.memory_space<vmem>>, %arg14: memref<1x128xf32, #tpu.memory_space<vmem>>, %arg15: memref<1x128xf32, #tpu.memory_space<vmem>>) attributes {dimension_semantics = [#tpu.dimension_semantics<arbitrary>, #tpu.dimension_semantics<arbitrary>], iteration_bounds = array<i64: 3, 2>, scalar_prefetch = 0 : i64, scratch_operands = 4 : i64, tpu.core_type = #tpu.core_type<tc>, window_params = [{transform_indices = @transform_0, window_bounds = array<i64: 16, 32>}, {pipeline_mode = #tpu.pipeline_mode<synchronous>, transform_indices = @transform_1, window_bounds = array<i64: 32, 128>}, {transform_indices = @transform_2, window_bounds = array<i64: 1, 128, 128>}, {transform_indices = @transform_3, window_bounds = array<i64: 1, 1, 128>}, {transform_indices = @transform_4, window_bounds = array<i64: 1, 128, 128>}, {transform_indices = @transform_5, window_bounds = array<i64: 1, 1, 128>}, {pipeline_mode = #tpu.pipeline_mode<synchronous>, transform_indices = @transform_6, window_bounds = array<i64: 1, 128>}, {pipeline_mode = #tpu.pipeline_mode<synchronous>, transform_indices = @transform_7, window_bounds = array<i64: 1, 128>}, {pipeline_mode = #tpu.pipeline_mode<synchronous>, transform_indices = @transform_8, window_bounds = array<i64: 2, 32>}, {transform_indices = @transform_9, window_bounds = array<i64: 1, 2, 128>}]} {
    %c0_i32 = arith.constant 0 : i32
    %0 = arith.cmpi eq, %arg0, %c0_i32 : i32
    %c0_i32_0 = arith.constant 0 : i32
    %1 = arith.cmpi eq, %arg1, %c0_i32_0 : i32
    %2 = arith.andi %0, %1 : i1
    %3 = arith.extui %2 : i1 to i32
    %c0_i32_1 = arith.constant 0 : i32
    %4 = arith.cmpi ne, %3, %c0_i32_1 : i32
    scf.if %4 {
      %c0_37 = arith.constant 0 : index
      %c0_38 = arith.constant 0 : index
      %58 = vector.load %arg3[%c0_37, %c0_38] : memref<32x128xf32, #tpu.memory_space<vmem>>, vector<32x128xf32>
      %c0_39 = arith.constant 0 : index
      %c0_40 = arith.constant 0 : index
      %59 = vector.load %arg12[%c0_39, %c0_40] : memref<32x128xf32, #tpu.memory_space<vmem>>, vector<32x128xf32>
      tpu.vector_store %arg12[%c0_39, %c0_40], %58 {strides = array<i32>} : memref<32x128xf32, #tpu.memory_space<vmem>>, vector<32x128xf32>,
    } else {
    }
    %c0_i32_2 = arith.constant 0 : i32
    %5 = arith.cmpi eq, %arg1, %c0_i32_2 : i32
    %6 = arith.extui %5 : i1 to i32
    %c0_i32_3 = arith.constant 0 : i32
    %7 = arith.cmpi ne, %6, %c0_i32_3 : i32
    scf.if %7 {
      %cst_37 = arith.constant 0.000000e+00 : f32
      %58 = vector.broadcast %cst_37 : f32 to vector<1x128xf32>
      %c0_38 = arith.constant 0 : index
      %c0_39 = arith.constant 0 : index
      %59 = vector.load %arg14[%c0_38, %c0_39] : memref<1x128xf32, #tpu.memory_space<vmem>>, vector<1x128xf32>
      tpu.vector_store %arg14[%c0_38, %c0_39], %58 {strides = array<i32>} : memref<1x128xf32, #tpu.memory_space<vmem>>, vector<1x128xf32>,
      %cst_40 = arith.constant 0.000000e+00 : f32
      %60 = vector.broadcast %cst_40 : f32 to vector<1x128xf32>
      %c0_41 = arith.constant 0 : index
      %c0_42 = arith.constant 0 : index
      %61 = vector.load %arg15[%c0_41, %c0_42] : memref<1x128xf32, #tpu.memory_space<vmem>>, vector<1x128xf32>
      tpu.vector_store %arg15[%c0_41, %c0_42], %60 {strides = array<i32>} : memref<1x128xf32, #tpu.memory_space<vmem>>, vector<1x128xf32>,
    } else {
    }
    %c16_i32 = arith.constant 16 : i32
    %8 = arith.muli %arg1, %c16_i32 : i32
    %9 = tpu.assume_multiple %8, 16 : i32
    %c0 = arith.constant 0 : index
    %c0_4 = arith.constant 0 : index
    %10 = vector.load %arg12[%c0, %c0_4] : memref<32x128xf32, #tpu.memory_space<vmem>>, vector<32x128xf32>
    %11 = arith.index_cast %9 : i32 to index
    %c0_5 = arith.constant 0 : index
    %12 = vector.load %arg12[%11, %c0_5] : memref<32x128xf32, #tpu.memory_space<vmem>>, vector<16x128xf32>
    %c0_6 = arith.constant 0 : index
    %c0_7 = arith.constant 0 : index
    %13 = vector.load %arg2[%c0_6, %c0_7] : memref<16x32xbf16, #tpu.memory_space<vmem>>, vector<16x32xbf16>
    %14 = arith.truncf %10 : vector<32x128xf32> to vector<32x128xbf16>
    %cst = arith.constant dense<0.000000e+00> : vector<16x128xf32>
    %15 = tpu.matmul %13, %14, %cst {dimension_numbers = #tpu.dot_dimension_numbers<[1], [0], [0], [1], [0, 0, 1, 1], [], []>} : vector<16x32xbf16>, vector<32x128xbf16>, vector<16x128xf32> -> vector<16x128xf32>
    %16 = arith.addf %15, %12 : vector<16x128xf32>
    %c0_8 = arith.constant 0 : index
    %c0_9 = arith.constant 0 : index
    %c0_10 = arith.constant 0 : index
    %17 = vector.load %arg4[%c0_8, %c0_9, %c0_10] : memref<1x128x128xf32, #tpu.memory_space<vmem>>, vector<1x128x128xf32>
    %18 = vector.shape_cast %17 : vector<1x128x128xf32> to vector<128x128xf32>
    %cst_11 = arith.constant dense<0.000000e+00> : vector<16x128xf32>
    %19 = tpu.matmul %16, %18, %cst_11 {dimension_numbers = #tpu.dot_dimension_numbers<[1], [0], [0], [1], [0, 0, 1, 1], [], []>} : vector<16x128xf32>, vector<128x128xf32>, vector<16x128xf32> -> vector<16x128xf32>
    %c0_12 = arith.constant 0 : index
    %c0_13 = arith.constant 0 : index
    %c0_14 = arith.constant 0 : index
    %20 = vector.load %arg5[%c0_12, %c0_13, %c0_14] : memref<1x1x128xf32, #tpu.memory_space<vmem>>, vector<1x1x128xf32>
    %21 = vector.shape_cast %20 : vector<1x1x128xf32> to vector<1x128xf32>
    %22 = vector.broadcast %21 : vector<1x128xf32> to vector<16x128xf32>
    %23 = arith.addf %19, %22 : vector<16x128xf32>
    %cst_15 = arith.constant 0.000000e+00 : f32
    %24 = vector.broadcast %cst_15 : f32 to vector<16x128xf32>
    %25 = arith.maximumf %23, %24 : vector<16x128xf32>
    %c0_16 = arith.constant 0 : index
    %c0_17 = arith.constant 0 : index
    %c0_18 = arith.constant 0 : index
    %26 = vector.load %arg6[%c0_16, %c0_17, %c0_18] : memref<1x128x128xf32, #tpu.memory_space<vmem>>, vector<1x128x128xf32>
    %27 = vector.shape_cast %26 : vector<1x128x128xf32> to vector<128x128xf32>
    %cst_19 = arith.constant dense<0.000000e+00> : vector<16x128xf32>
    %28 = tpu.matmul %25, %27, %cst_19 {dimension_numbers = #tpu.dot_dimension_numbers<[1], [0], [0], [1], [0, 0, 1, 1], [], []>} : vector<16x128xf32>, vector<128x128xf32>, vector<16x128xf32> -> vector<16x128xf32>
    %c0_20 = arith.constant 0 : index
    %c0_21 = arith.constant 0 : index
    %c0_22 = arith.constant 0 : index
    %29 = vector.load %arg7[%c0_20, %c0_21, %c0_22] : memref<1x1x128xf32, #tpu.memory_space<vmem>>, vector<1x1x128xf32>
    %30 = vector.shape_cast %29 : vector<1x1x128xf32> to vector<1x128xf32>
    %31 = vector.broadcast %30 : vector<1x128xf32> to vector<16x128xf32>
    %32 = arith.addf %28, %31 : vector<16x128xf32>
    %cst_23 = arith.constant 0.000000e+00 : f32
    %33 = vector.broadcast %cst_23 : f32 to vector<16x128xf32>
    %34 = arith.maximumf %32, %33 : vector<16x128xf32>
    %35 = tpu.iota {dimensions = array<i32: 0>} : vector<16x128xi32>
    %36 = vector.broadcast %9 : i32 to vector<16x128xi32>
    %37 = arith.addi %35, %36 : vector<16x128xi32>
    %c24_i32 = arith.constant 24 : i32
    %38 = vector.broadcast %c24_i32 : i32 to vector<16x128xi32>
    %39 = arith.cmpi slt, %37, %38 : vector<16x128xi32>
    %cst_24 = arith.constant 0.000000e+00 : f32
    %40 = vector.broadcast %cst_24 : f32 to vector<16x128xf32>
    %41 = arith.select %39, %34, %40 : vector<16x128xi1>, vector<16x128xf32>
    %c0_25 = arith.constant 0 : index
    %c0_26 = arith.constant 0 : index
    %42 = vector.load %arg14[%c0_25, %c0_26] : memref<1x128xf32, #tpu.memory_space<vmem>>, vector<1x128xf32>
    %cst_27 = arith.constant dense<0.000000e+00> : vector<128xf32>
    %43 = vector.multi_reduction <add>, %41, %cst_27 [0] : vector<16x128xf32> to vector<128xf32>
    %44 = vector.shape_cast %43 : vector<128xf32> to vector<1x128xf32>
    %45 = arith.addf %42, %44 : vector<1x128xf32>
    %c0_28 = arith.constant 0 : index
    %c0_29 = arith.constant 0 : index
    %46 = vector.load %arg14[%c0_28, %c0_29] : memref<1x128xf32, #tpu.memory_space<vmem>>, vector<1x128xf32>
    tpu.vector_store %arg14[%c0_28, %c0_29], %45 {strides = array<i32>} : memref<1x128xf32, #tpu.memory_space<vmem>>, vector<1x128xf32>,
    %c0_30 = arith.constant 0 : index
    %c0_31 = arith.constant 0 : index
    %47 = vector.load %arg15[%c0_30, %c0_31] : memref<1x128xf32, #tpu.memory_space<vmem>>, vector<1x128xf32>
    %48 = arith.mulf %41, %41 : vector<16x128xf32>
    %cst_32 = arith.constant dense<0.000000e+00> : vector<128xf32>
    %49 = vector.multi_reduction <add>, %48, %cst_32 [0] : vector<16x128xf32> to vector<128xf32>
    %50 = vector.shape_cast %49 : vector<128xf32> to vector<1x128xf32>
    %51 = arith.addf %47, %50 : vector<1x128xf32>
    %c0_33 = arith.constant 0 : index
    %c0_34 = arith.constant 0 : index
    %52 = vector.load %arg15[%c0_33, %c0_34] : memref<1x128xf32, #tpu.memory_space<vmem>>, vector<1x128xf32>
    tpu.vector_store %arg15[%c0_33, %c0_34], %51 {strides = array<i32>} : memref<1x128xf32, #tpu.memory_space<vmem>>, vector<1x128xf32>,
    %53 = arith.index_cast %9 : i32 to index
    %c0_35 = arith.constant 0 : index
    %54 = vector.load %arg13[%53, %c0_35] : memref<32x128xf32, #tpu.memory_space<vmem>>, vector<16x128xf32>
    tpu.vector_store %arg13[%53, %c0_35], %41 {strides = array<i32>} : memref<32x128xf32, #tpu.memory_space<vmem>>, vector<16x128xf32>,
    %c1_i32 = arith.constant 1 : i32
    %55 = arith.cmpi eq, %arg1, %c1_i32 : i32
    %56 = arith.extui %55 : i1 to i32
    %c0_i32_36 = arith.constant 0 : i32
    %57 = arith.cmpi ne, %56, %c0_i32_36 : i32
    scf.if %57 {
      %c0_37 = arith.constant 0 : index
      %c0_38 = arith.constant 0 : index
      %58 = vector.load %arg14[%c0_37, %c0_38] : memref<1x128xf32, #tpu.memory_space<vmem>>, vector<1x128xf32>
      %cst_39 = arith.constant 0.0416666679 : f32
      %59 = vector.broadcast %cst_39 : f32 to vector<1x128xf32>
      %60 = arith.mulf %58, %59 : vector<1x128xf32>
      %c0_40 = arith.constant 0 : index
      %c0_41 = arith.constant 0 : index
      %61 = vector.load %arg15[%c0_40, %c0_41] : memref<1x128xf32, #tpu.memory_space<vmem>>, vector<1x128xf32>
      %cst_42 = arith.constant 0.0416666679 : f32
      %62 = vector.broadcast %cst_42 : f32 to vector<1x128xf32>
      %63 = arith.mulf %61, %62 : vector<1x128xf32>
      %64 = arith.mulf %60, %60 : vector<1x128xf32>
      %65 = arith.subf %63, %64 : vector<1x128xf32>
      %cst_43 = arith.constant 0.000000e+00 : f32
      %66 = vector.broadcast %cst_43 : f32 to vector<1x128xf32>
      %67 = arith.maximumf %65, %66 : vector<1x128xf32>
      %cst_44 = arith.constant 9.99999974E-6 : f32
      %68 = vector.broadcast %cst_44 : f32 to vector<1x128xf32>
      %69 = arith.addf %67, %68 : vector<1x128xf32>
      %70 = math.rsqrt %69 : vector<1x128xf32>
      %c0_45 = arith.constant 0 : index
      %c0_46 = arith.constant 0 : index
      %71 = vector.load %arg8[%c0_45, %c0_46] : memref<1x128xf32, #tpu.memory_space<vmem>>, vector<1x128xf32>
      %72 = arith.mulf %71, %70 : vector<1x128xf32>
      %c0_47 = arith.constant 0 : index
      %c0_48 = arith.constant 0 : index
      %73 = vector.load %arg9[%c0_47, %c0_48] : memref<1x128xf32, #tpu.memory_space<vmem>>, vector<1x128xf32>
      %74 = arith.mulf %60, %72 : vector<1x128xf32>
      %75 = arith.subf %73, %74 : vector<1x128xf32>
      %c0_49 = arith.constant 0 : index
      %c0_50 = arith.constant 0 : index
      %76 = vector.load %arg13[%c0_49, %c0_50] : memref<32x128xf32, #tpu.memory_space<vmem>>, vector<32x128xf32>
      %77 = vector.broadcast %72 : vector<1x128xf32> to vector<32x128xf32>
      %78 = arith.mulf %76, %77 : vector<32x128xf32>
      %79 = vector.broadcast %75 : vector<1x128xf32> to vector<32x128xf32>
      %80 = arith.addf %78, %79 : vector<32x128xf32>
      %c0_51 = arith.constant 0 : index
      %c0_52 = arith.constant 0 : index
      %81 = vector.load %arg12[%c0_51, %c0_52] : memref<32x128xf32, #tpu.memory_space<vmem>>, vector<32x128xf32>
      tpu.vector_store %arg12[%c0_51, %c0_52], %80 {strides = array<i32>} : memref<32x128xf32, #tpu.memory_space<vmem>>, vector<32x128xf32>,
      %c0_53 = arith.constant 0 : index
      %c0_54 = arith.constant 0 : index
      %82 = vector.load %arg10[%c0_53, %c0_54] : memref<2x32xf32, #tpu.memory_space<vmem>>, vector<2x32xf32>
      %cst_55 = arith.constant dense<0.000000e+00> : vector<2x128xf32>
      %83 = tpu.matmul %82, %80, %cst_55 {dimension_numbers = #tpu.dot_dimension_numbers<[1], [0], [0], [1], [0, 0, 1, 1], [], []>} : vector<2x32xf32>, vector<32x128xf32>, vector<2x128xf32> -> vector<2x128xf32>
      %c0_56 = arith.constant 0 : index
      %c0_57 = arith.constant 0 : index
      %c0_58 = arith.constant 0 : index
      %84 = vector.load %arg11[%c0_56, %c0_57, %c0_58] : memref<1x2x128xf32, #tpu.memory_space<vmem>>, vector<1x2x128xf32>
      %85 = vector.shape_cast %84 : vector<1x2x128xf32> to vector<2x128xf32>
      %86 = vector.shape_cast %83 : vector<2x128xf32> to vector<1x2x128xf32>
      tpu.vector_store %arg11[%c0_56, %c0_57, %c0_58], %86 {strides = array<i32>} : memref<1x2x128xf32, #tpu.memory_space<vmem>>, vector<1x2x128xf32>,
    } else {
    }
    return
  }
  func.func @transform_0(%arg0: i32, %arg1: i32) -> (i32, i32) {
    %c0_i32 = arith.constant 0 : i32
    %c0_i32_0 = arith.constant 0 : i32
    return %arg1, %c0_i32 : i32, i32
  }
  func.func @transform_1(%arg0: i32, %arg1: i32) -> (i32, i32) {
    %c0_i32 = arith.constant 0 : i32
    %c0_i32_0 = arith.constant 0 : i32
    %c0_i32_1 = arith.constant 0 : i32
    return %c0_i32, %c0_i32_0 : i32, i32
  }
  func.func @transform_2(%arg0: i32, %arg1: i32) -> (i32, i32, i32) {
    %c0_i32 = arith.constant 0 : i32
    %c0_i32_0 = arith.constant 0 : i32
    %c0_i32_1 = arith.constant 0 : i32
    return %arg0, %c0_i32, %c0_i32_0 : i32, i32, i32
  }
  func.func @transform_3(%arg0: i32, %arg1: i32) -> (i32, i32, i32) {
    %c0_i32 = arith.constant 0 : i32
    %c0_i32_0 = arith.constant 0 : i32
    %c0_i32_1 = arith.constant 0 : i32
    return %arg0, %c0_i32, %c0_i32_0 : i32, i32, i32
  }
  func.func @transform_4(%arg0: i32, %arg1: i32) -> (i32, i32, i32) {
    %c0_i32 = arith.constant 0 : i32
    %c0_i32_0 = arith.constant 0 : i32
    %c0_i32_1 = arith.constant 0 : i32
    return %arg0, %c0_i32, %c0_i32_0 : i32, i32, i32
  }
  func.func @transform_5(%arg0: i32, %arg1: i32) -> (i32, i32, i32) {
    %c0_i32 = arith.constant 0 : i32
    %c0_i32_0 = arith.constant 0 : i32
    %c0_i32_1 = arith.constant 0 : i32
    return %arg0, %c0_i32, %c0_i32_0 : i32, i32, i32
  }
  func.func @transform_6(%arg0: i32, %arg1: i32) -> (i32, i32) {
    %c0_i32 = arith.constant 0 : i32
    %c0_i32_0 = arith.constant 0 : i32
    %c0_i32_1 = arith.constant 0 : i32
    return %c0_i32, %c0_i32_0 : i32, i32
  }
  func.func @transform_7(%arg0: i32, %arg1: i32) -> (i32, i32) {
    %c0_i32 = arith.constant 0 : i32
    %c0_i32_0 = arith.constant 0 : i32
    %c0_i32_1 = arith.constant 0 : i32
    return %c0_i32, %c0_i32_0 : i32, i32
  }
  func.func @transform_8(%arg0: i32, %arg1: i32) -> (i32, i32) {
    %c0_i32 = arith.constant 0 : i32
    %c0_i32_0 = arith.constant 0 : i32
    %c0_i32_1 = arith.constant 0 : i32
    return %c0_i32, %c0_i32_0 : i32, i32
  }
  func.func @transform_9(%arg0: i32, %arg1: i32) -> (i32, i32, i32) {
    %c0_i32 = arith.constant 0 : i32
    %c0_i32_0 = arith.constant 0 : i32
    %c0_i32_1 = arith.constant 0 : i32
    return %arg0, %c0_i32, %c0_i32_0 : i32, i32, i32
  }
}

</mosaic_0001>

<llo_original>
// kernel: tpu_custom_call.1
$region0: #{tpu_custom_call.1}
  #allocation0 [shape = 'u32[]', space=smem, size = 0x4, offset = 0x4, fixed_abs, tag = 'smem constant byte address 0x4 - core index']
  #allocation1 [shape = 'u32[144,128]{1,0:T(1,128)}', space=vmem, size = 0x12000, scoped, tag = 'internal scratch']
  #allocation2 [shape = 'f32[32,128]{1,0:T(8,128)}', space=vmem, size = 0x4000, scoped, tag = 'scratch operand']
  #allocation3 [shape = 'f32[32,128]{1,0:T(8,128)}', space=vmem, size = 0x4000, scoped, tag = 'scratch operand']
  #allocation4 [shape = 'f32[1,128]{1,0:T(1,128)}', space=vmem, size = 0x200, scoped, tag = 'scratch operand']
  #allocation5 [shape = 'f32[1,128]{1,0:T(1,128)}', space=vmem, size = 0x200, scoped, tag = 'scratch operand']
  %s0 = inlined_call_operand.hbm [shape: bf16[32,32], index: 0, kind: input, shape index: {}]
  %s1 = inlined_call_operand.hbm [shape: f32[32,128], index: 1, kind: input, shape index: {}]
  %s2 = inlined_call_operand.hbm [shape: f32[3,128,128], index: 2, kind: input, shape index: {}]
  %s3 = inlined_call_operand.vmem [shape: f32[3,1,128], index: 3, kind: input, shape index: {}]
  %s4 = inlined_call_operand.hbm [shape: f32[3,128,128], index: 4, kind: input, shape index: {}]
  %s5 = inlined_call_operand.vmem [shape: f32[3,1,128], index: 5, kind: input, shape index: {}]
  %s6 = inlined_call_operand.vmem [shape: f32[1,128], index: 6, kind: input, shape index: {}]
  %s7 = inlined_call_operand.vmem [shape: f32[1,128], index: 7, kind: input, shape index: {}]
  %s8 = inlined_call_operand.vmem [shape: f32[2,32], index: 8, kind: input, shape index: {}]
  %s9 = inlined_call_operand.hbm [shape: f32[3,2,128], index: 9, kind: output, shape index: {}]
  %s10 = sld [smem:[#allocation0]]
  $region97: #{tpu_custom_call.1} parent=0
    _
  %s12 = ssub.s32 1, %s10
  %s13 = scalar_select 0, %s12, %s10
  $region1: #{tpu_custom_call.1} parent=0
    #allocation6 [shape = 'u8[8192]{0}', space=vmem, size = 0x2000, scoped, tag = 'input window, operand 0']
    #allocation7 [shape = 's32[2]{0}', space=sflag, size = 0x8, scoped, tag = 'scoped memory for tpu_custom_call.1']
    #allocation8 [shape = 's32[2]{0}', space=sflag, size = 0x8, scoped, tag = 'scoped memory for tpu_custom_call.1']
    #allocation9 [shape = 'u8[16384]{0}', space=vmem, size = 0x4000, scoped, tag = 'input window, operand 1, single buffered']
    #allocation10 [shape = 's32[1]{0}', space=sflag, size = 0x4, scoped, tag = 'scoped memory for tpu_custom_call.1']
    #allocation11 [shape = 'u8[131072]{0}', space=vmem, size = 0x20000, scoped, tag = 'input window, operand 2']
    #allocation12 [shape = 'u8[131072]{0}', space=vmem, size = 0x20000, scoped, tag = 'input window, operand 4']
    #allocation13 [shape = 'u8[2048]{0}', space=vmem, size = 0x800, scoped, tag = 'output window, operand 0']
    %14 = vsyncpa [#allocation7], 0
    %s15 = scalar_lea.sflag [#allocation7], 1
    %16 = vsyncpa %s15, 0
    %17 = vsyncpa [#allocation10], 0
    %18 = vsyncpa [#allocation8], 0
    %s19 = scalar_lea.sflag [#allocation8], 1
    %20 = vsyncpa %s19, 0
    loop: start=0, step=1, limit=8
    $region2: #{tpu_custom_call.1} parent=1 // loop_pre_header
      _
    $region3: #{tpu_custom_call.1} parent=1 // loop_header
      %s22 = sphi 0, %s26
      %p23 = scmp.ge.s32.totalorder %s22, 8
      %s29 = sphi 0, %s41
      %s30 = sphi 0, %s37
      %s31 = sphi 0, %s29
      %s32 = sphi 0, %s30
      %s33 = sphi 0, %s31
      %s34 = sphi 0, %s32
      %s44 = sphi 0, %s46
      %s47 = sphi 0, %s44
      %s48 = sphi 0, %s47
      %s64 = sphi 0, %s48
      %s68 = sphi 0, %s68
      %s70 = sphi 0, %s68
      %s71 = sphi 0, %s70
      %s85 = sphi 0, %s71
      %s91 = sphi 0, %s93
      %s94 = sphi 0, %s91
      %s95 = sphi 0, %s94
      %s111 = sphi 0, %s95
      %s117 = sphi 0, %s119
      %s120 = sphi 0, %s117
      %s121 = sphi 0, %s120
      %s137 = sphi 0, %s121
      %s143 = sphi 0, %s145
      %s146 = sphi 0, %s143
      %s147 = sphi 0, %s146
      %s163 = sphi 0, %s147
      %s169 = sphi 0, %s171
      %s172 = sphi 0, %s169
      %s173 = sphi 0, %s172
      %s189 = sphi 0, %s173
      %s193 = sphi 0, %s193
      %s195 = sphi 0, %s193
      %s196 = sphi 0, %s195
      %s210 = sphi 0, %s196
      %s214 = sphi 0, %s214
      %s216 = sphi 0, %s214
      %s217 = sphi 0, %s216
      %s231 = sphi 0, %s217
      %s235 = sphi 0, %s235
      %s237 = sphi 0, %s235
      %s238 = sphi 0, %s237
      %s252 = sphi 0, %s238
      %s258 = sphi 0, %s260
      %s261 = sphi 0, %s258
      %s262 = sphi 0, %s261
      %s278 = sphi 0, %s262
    $region4: #{tpu_custom_call.1} parent=1 // loop_header_branch
      %25 = sbr.rel (%p23) target = $region8
    $region5: #{tpu_custom_call.1} parent=1 // loop_body
      %s27 = ssub.s32 %s22, 1
      %s28 = ssub.s32 %s22, 2
      %s35 = sadd.s32 1, %s30
      %p36 = scmp.ge.s32.totalorder %s35, 2
      %s37 = scalar_select %p36, 0, %s35
      %s38 = sadd.s32 1, %s29
      %s39 = scalar_select %p36, %s38, %s29
      %p40 = scmp.ge.s32.totalorder %s39, 3
      %s41 = scalar_select %p40, 0, %s39
      %s42 = ssub.s32 %s30, %s37
      %p43 = scmp.eq.s32.totalorder %s42, 0
      %s45 = sadd.s32 %s44, 1
      %s46 = scalar_select %p43, %s44, %s45
      %p49 = pneg %p43
      %p50 = scmp.eq.s32.totalorder %s22, 5
      %p51 = por %p49, %p50
      %p52 = scmp.ne.s32.totalorder %s44, %s47
      %p53 = scmp.eq.s32.totalorder %s22, 0
      %p54 = por %p52, %p53
      %p55 = scmp.ne.s32.totalorder %s44, %s47
      %p56 = scmp.eq.s32.totalorder %s27, 5
      %p57 = por %p55, %p56
      %p58 = scmp.ne.s32.totalorder %s47, %s48
      %p59 = scmp.eq.s32.totalorder %s27, 0
      %p60 = por %p58, %p59
      %p61 = scmp.ne.s32.totalorder %s47, %s48
      %p62 = scmp.eq.s32.totalorder %s28, 5
      %p63 = por %p61, %p62
      %p65 = scmp.ne.s32.totalorder %s48, %s64
      %p66 = scmp.eq.s32.totalorder %s28, 0
      %p67 = por %p65, %p66
      %s69 = sadd.s32 %s68, 1
      %p72 = scmp.eq.s32.totalorder %s22, 5
      %p73 = scmp.ne.s32.totalorder %s68, %s70
      %p74 = scmp.eq.s32.totalorder %s22, 0
      %p75 = por %p73, %p74
      %p76 = scmp.ne.s32.totalorder %s68, %s70
      %p77 = scmp.eq.s32.totalorder %s27, 5
      %p78 = por %p76, %p77
      %p79 = scmp.ne.s32.totalorder %s70, %s71
      %p80 = scmp.eq.s32.totalorder %s27, 0
      %p81 = por %p79, %p80
      %p82 = scmp.ne.s32.totalorder %s70, %s71
      %p83 = scmp.eq.s32.totalorder %s28, 5
      %p84 = por %p82, %p83
      %p86 = scmp.ne.s32.totalorder %s71, %s85
      %p87 = scmp.eq.s32.totalorder %s28, 0
      %p88 = por %p86, %p87
      %s89 = ssub.s32 %s29, %s41
      %p90 = scmp.eq.s32.totalorder %s89, 0
      %s92 = sadd.s32 %s91, 1
      %s93 = scalar_select %p90, %s91, %s92
      %p96 = pneg %p90
      %p97 = scmp.eq.s32.totalorder %s22, 5
      %p98 = por %p96, %p97
      %p99 = scmp.ne.s32.totalorder %s91, %s94
      %p100 = scmp.eq.s32.totalorder %s22, 0
      %p101 = por %p99, %p100
      %p102 = scmp.ne.s32.totalorder %s91, %s94
      %p103 = scmp.eq.s32.totalorder %s27, 5
      %p104 = por %p102, %p103
      %p105 = scmp.ne.s32.totalorder %s94, %s95
      %p106 = scmp.eq.s32.totalorder %s27, 0
      %p107 = por %p105, %p106
      %p108 = scmp.ne.s32.totalorder %s94, %s95
      %p109 = scmp.eq.s32.totalorder %s28, 5
      %p110 = por %p108, %p109
      %p112 = scmp.ne.s32.totalorder %s95, %s111
      %p113 = scmp.eq.s32.totalorder %s28, 0
      %p114 = por %p112, %p113
      %s115 = ssub.s32 %s29, %s41
      %p116 = scmp.eq.s32.totalorder %s115, 0
      %s118 = sadd.s32 %s117, 1
      %s119 = scalar_select %p116, %s117, %s118
      %p122 = pneg %p116
      %p123 = scmp.eq.s32.totalorder %s22, 5
      %p124 = por %p122, %p123
      %p125 = scmp.ne.s32.totalorder %s117, %s120
      %p126 = scmp.eq.s32.totalorder %s22, 0
      %p127 = por %p125, %p126
      %p128 = scmp.ne.s32.totalorder %s117, %s120
      %p129 = scmp.eq.s32.totalorder %s27, 5
      %p130 = por %p128, %p129
      %p131 = scmp.ne.s32.totalorder %s120, %s121
      %p132 = scmp.eq.s32.totalorder %s27, 0
      %p133 = por %p131, %p132
      %p134 = scmp.ne.s32.totalorder %s120, %s121
      %p135 = scmp.eq.s32.totalorder %s28, 5
      %p136 = por %p134, %p135
      %p138 = scmp.ne.s32.totalorder %s121, %s137
      %p139 = scmp.eq.s32.totalorder %s28, 0
      %p140 = por %p138, %p139
      %s141 = ssub.s32 %s29, %s41
      %p142 = scmp.eq.s32.totalorder %s141, 0
      %s144 = sadd.s32 %s143, 1
      %s145 = scalar_select %p142, %s143, %s144
      %p148 = pneg %p142
      %p149 = scmp.eq.s32.totalorder %s22, 5
      %p150 = por %p148, %p149
      %p151 = scmp.ne.s32.totalorder %s143, %s146
      %p152 = scmp.eq.s32.totalorder %s22, 0
      %p153 = por %p151, %p152
      %p154 = scmp.ne.s32.totalorder %s143, %s146
      %p155 = scmp.eq.s32.totalorder %s27, 5
      %p156 = por %p154, %p155
      %p157 = scmp.ne.s32.totalorder %s146, %s147
      %p158 = scmp.eq.s32.totalorder %s27, 0
      %p159 = por %p157, %p158
      %p160 = scmp.ne.s32.totalorder %s146, %s147
      %p161 = scmp.eq.s32.totalorder %s28, 5
      %p162 = por %p160, %p161
      %p164 = scmp.ne.s32.totalorder %s147, %s163
      %p165 = scmp.eq.s32.totalorder %s28, 0
      %p166 = por %p164, %p165
      %s167 = ssub.s32 %s29, %s41
      %p168 = scmp.eq.s32.totalorder %s167, 0
      %s170 = sadd.s32 %s169, 1
      %s171 = scalar_select %p168, %s169, %s170
      %p174 = pneg %p168
      %p175 = scmp.eq.s32.totalorder %s22, 5
      %p176 = por %p174, %p175
      %p177 = scmp.ne.s32.totalorder %s169, %s172
      %p178 = scmp.eq.s32.totalorder %s22, 0
      %p179 = por %p177, %p178
      %p180 = scmp.ne.s32.totalorder %s169, %s172
      %p181 = scmp.eq.s32.totalorder %s27, 5
      %p182 = por %p180, %p181
      %p183 = scmp.ne.s32.totalorder %s172, %s173
      %p184 = scmp.eq.s32.totalorder %s27, 0
      %p185 = por %p183, %p184
      %p186 = scmp.ne.s32.totalorder %s172, %s173
      %p187 = scmp.eq.s32.totalorder %s28, 5
      %p188 = por %p186, %p187
      %p190 = scmp.ne.s32.totalorder %s173, %s189
      %p191 = scmp.eq.s32.totalorder %s28, 0
      %p192 = por %p190, %p191
      %s194 = sadd.s32 %s193, 1
      %p197 = scmp.eq.s32.totalorder %s22, 5
      %p198 = scmp.ne.s32.totalorder %s193, %s195
      %p199 = scmp.eq.s32.totalorder %s22, 0
      %p200 = por %p198, %p199
      %p201 = scmp.ne.s32.totalorder %s193, %s195
      %p202 = scmp.eq.s32.totalorder %s27, 5
      %p203 = por %p201, %p202
      %p204 = scmp.ne.s32.totalorder %s195, %s196
      %p205 = scmp.eq.s32.totalorder %s27, 0
      %p206 = por %p204, %p205
      %p207 = scmp.ne.s32.totalorder %s195, %s196
      %p208 = scmp.eq.s32.totalorder %s28, 5
      %p209 = por %p207, %p208
      %p211 = scmp.ne.s32.totalorder %s196, %s210
      %p212 = scmp.eq.s32.totalorder %s28, 0
      %p213 = por %p211, %p212
      %s215 = sadd.s32 %s214, 1
      %p218 = scmp.eq.s32.totalorder %s22, 5
      %p219 = scmp.ne.s32.totalorder %s214, %s216
      %p220 = scmp.eq.s32.totalorder %s22, 0
      %p221 = por %p219, %p220
      %p222 = scmp.ne.s32.totalorder %s214, %s216
      %p223 = scmp.eq.s32.totalorder %s27, 5
      %p224 = por %p222, %p223
      %p225 = scmp.ne.s32.totalorder %s216, %s217
      %p226 = scmp.eq.s32.totalorder %s27, 0
      %p227 = por %p225, %p226
      %p228 = scmp.ne.s32.totalorder %s216, %s217
      %p229 = scmp.eq.s32.totalorder %s28, 5
      %p230 = por %p228, %p229
      %p232 = scmp.ne.s32.totalorder %s217, %s231
      %p233 = scmp.eq.s32.totalorder %s28, 0
      %p234 = por %p232, %p233
      %s236 = sadd.s32 %s235, 1
      %p239 = scmp.eq.s32.totalorder %s22, 5
      %p240 = scmp.ne.s32.totalorder %s235, %s237
      %p241 = scmp.eq.s32.totalorder %s22, 0
      %p242 = por %p240, %p241
      %p243 = scmp.ne.s32.totalorder %s235, %s237
      %p244 = scmp.eq.s32.totalorder %s27, 5
      %p245 = por %p243, %p244
      %p246 = scmp.ne.s32.totalorder %s237, %s238
      %p247 = scmp.eq.s32.totalorder %s27, 0
      %p248 = por %p246, %p247
      %p249 = scmp.ne.s32.totalorder %s237, %s238
      %p250 = scmp.eq.s32.totalorder %s28, 5
      %p251 = por %p249, %p250
      %p253 = scmp.ne.s32.totalorder %s238, %s252
      %p254 = scmp.eq.s32.totalorder %s28, 0
      %p255 = por %p253, %p254
      %s256 = ssub.s32 %s29, %s41
      %p257 = scmp.eq.s32.totalorder %s256, 0
      %s259 = sadd.s32 %s258, 1
      %s260 = scalar_select %p257, %s258, %s259
      %p263 = pneg %p257
      %p264 = scmp.eq.s32.totalorder %s22, 5
      %p265 = por %p263, %p264
      %p266 = scmp.ne.s32.totalorder %s258, %s261
      %p267 = scmp.eq.s32.totalorder %s22, 0
      %p268 = por %p266, %p267
      %p269 = scmp.ne.s32.totalorder %s258, %s261
      %p270 = scmp.eq.s32.totalorder %s27, 5
      %p271 = por %p269, %p270
      %p272 = scmp.ne.s32.totalorder %s261, %s262
      %p273 = scmp.eq.s32.totalorder %s27, 0
      %p274 = por %p272, %p273
      %p275 = scmp.ne.s32.totalorder %s261, %s262
      %p276 = scmp.eq.s32.totalorder %s28, 5
      %p277 = por %p275, %p276
      %p279 = scmp.ne.s32.totalorder %s262, %s278
      %p280 = scmp.eq.s32.totalorder %s28, 0
      %p281 = por %p279, %p280
      %p282 = scmp.le.s32.totalorder 1, %s22
      %p283 = scmp.lt.s32.totalorder %s22, 7
      %p284 = pnand %p282, %p283
      %p285 = pneg %p284
      // Predicated region
      $region9: #{tpu_custom_call.1} parent=5 // pred_check
        _
      $region10: #{tpu_custom_call.1} parent=5 // pred_check_branch
        %287 = sbr.rel (%p284) target = $region12
      $region11: #{tpu_custom_call.1} parent=5 // pred_region
        %s288 = ssub.s32 %s22, 1
        // Predicated region
        $region13: #{tpu_custom_call.1} parent=11 // pred_check
          %p289 = pneg %p81
        $region14: #{tpu_custom_call.1} parent=11 // pred_check_branch
          %291 = sbr.rel (%p289) target = $region16
        $region15: #{tpu_custom_call.1} parent=11 // pred_region
          %s293 = ssub.s32 512, 512
          %294 = vsyncadd [#allocation10], %s293
          %s295 = sshll.u32 [#allocation9], 4
          %s296 = int_to_ptr.vmem [resolvable:$true] %s295
          %301 = dma.hbm_to_vmem [thread:$0]  %s1, 512, %s296, [#allocation10], 128, 128, 8
        $region16: #{tpu_custom_call.1} parent=11 // pred_fallthru
          _
        // Predicated region
        $region17: #{tpu_custom_call.1} parent=11 // pred_check
          %p302 = pneg %p206
        $region18: #{tpu_custom_call.1} parent=11 // pred_check_branch
          %304 = sbr.rel (%p302) target = $region20
        $region19: #{tpu_custom_call.1} parent=11 // pred_region
          _
        $region20: #{tpu_custom_call.1} parent=11 // pred_fallthru
          _
        // Predicated region
        $region21: #{tpu_custom_call.1} parent=11 // pred_check
          %p305 = pneg %p227
        $region22: #{tpu_custom_call.1} parent=11 // pred_check_branch
          %307 = sbr.rel (%p305) target = $region24
        $region23: #{tpu_custom_call.1} parent=11 // pred_region
          _
        $region24: #{tpu_custom_call.1} parent=11 // pred_fallthru
          _
        // Predicated region
        $region25: #{tpu_custom_call.1} parent=11 // pred_check
          %p308 = pneg %p248
        $region26: #{tpu_custom_call.1} parent=11 // pred_check_branch
          %310 = sbr.rel (%p308) target = $region28
        $region27: #{tpu_custom_call.1} parent=11 // pred_region
          _
        $region28: #{tpu_custom_call.1} parent=11 // pred_fallthru
          _
      $region12: #{tpu_custom_call.1} parent=5 // pred_fallthru
        _
      %p311 = scmp.lt.s32.totalorder %s22, 6
      // Predicated region
      $region29: #{tpu_custom_call.1} parent=5 // pred_check
        %p312 = pneg %p311
      $region30: #{tpu_custom_call.1} parent=5 // pred_check_branch
        %314 = sbr.rel (%p312) target = $region32
      $region31: #{tpu_custom_call.1} parent=5 // pred_region
        // Predicated region
        $region33: #{tpu_custom_call.1} parent=31 // pred_check
          %p315 = pneg %p54
        $region34: #{tpu_custom_call.1} parent=31 // pred_check_branch
          %317 = sbr.rel (%p315) target = $region36
        $region35: #{tpu_custom_call.1} parent=31 // pred_region
          %s318 = sand.u32 %s22, 1
          %s319 = scalar_lea.sflag [#allocation7], %s318
          %s320 = sand.u32 %s44, 1
          %s321 = smul.addr %s320, 8
          %s322 = scalar_lea.vmem [#allocation6], %s321
          %s323 = smul.u32 2, %s30
          %s325 = ssub.s32 128, 128
          %326 = vsyncadd %s319, %s325
          %s327 = smul.addr %s323, 64
          %s328 = scalar_lea.hbm %s0, %s327
          %s329 = sshll.u32 %s322, 4
          %s330 = int_to_ptr.vmem [resolvable:$true] %s329
          %335 = dma.hbm_to_vmem [thread:$0]  %s328, 128, %s330, %s319, 64, 64, 4
        $region36: #{tpu_custom_call.1} parent=31 // pred_fallthru
          _
        // Predicated region
        $region37: #{tpu_custom_call.1} parent=31 // pred_check
          %p336 = pneg %p101
        $region38: #{tpu_custom_call.1} parent=31 // pred_check_branch
          %338 = sbr.rel (%p336) target = $region40
        $region39: #{tpu_custom_call.1} parent=31 // pred_region
          %s339 = sand.u32 %s22, 1
          %s340 = scalar_lea.sflag [#allocation7], %s339
          %s341 = sand.u32 %s91, 1
          %s342 = smul.addr %s341, 128
          %s343 = scalar_lea.vmem [#allocation11], %s342
          %s345 = ssub.s32 2048, 2048
          %346 = vsyncadd %s340, %s345
          %s347 = smul.addr %s29, 16
          %s348 = smul.addr %s347, 128
          %s349 = scalar_lea.hbm %s2, %s348
          %s350 = sshll.u32 %s343, 4
          %s351 = int_to_ptr.vmem [resolvable:$true] %s350
          %356 = dma.hbm_to_vmem [thread:$0]  %s349, 2048, %s351, %s340, 128, 128, 8
        $region40: #{tpu_custom_call.1} parent=31 // pred_fallthru
          _
        // Predicated region
        $region41: #{tpu_custom_call.1} parent=31 // pred_check
          %p357 = pneg %p127
        $region42: #{tpu_custom_call.1} parent=31 // pred_check_branch
          %359 = sbr.rel (%p357) target = $region44
        $region43: #{tpu_custom_call.1} parent=31 // pred_region
          %p360 = scmp.lt.s32.totalorder %s29, 2
          %s361 = scalar_select %p360, %s29, 2
          %s362 = scalar_lea.vmem %s3, %s361
        $region44: #{tpu_custom_call.1} parent=31 // pred_fallthru
          _
        // Predicated region
        $region45: #{tpu_custom_call.1} parent=31 // pred_check
          %p363 = pneg %p153
        $region46: #{tpu_custom_call.1} parent=31 // pred_check_branch
          %365 = sbr.rel (%p363) target = $region48
        $region47: #{tpu_custom_call.1} parent=31 // pred_region
          %s366 = sand.u32 %s22, 1
          %s367 = scalar_lea.sflag [#allocation7], %s366
          %s368 = sand.u32 %s143, 1
          %s369 = smul.addr %s368, 128
          %s370 = scalar_lea.vmem [#allocation12], %s369
          %s372 = ssub.s32 2048, 2048
          %373 = vsyncadd %s367, %s372
          %s374 = smul.addr %s29, 16
          %s375 = smul.addr %s374, 128
          %s376 = scalar_lea.hbm %s4, %s375
          %s377 = sshll.u32 %s370, 4
          %s378 = int_to_ptr.vmem [resolvable:$true] %s377
          %383 = dma.hbm_to_vmem [thread:$0]  %s376, 2048, %s378, %s367, 128, 128, 8
        $region48: #{tpu_custom_call.1} parent=31 // pred_fallthru
          _
        // Predicated region
        $region49: #{tpu_custom_call.1} parent=31 // pred_check
          %p384 = pneg %p179
        $region50: #{tpu_custom_call.1} parent=31 // pred_check_branch
          %386 = sbr.rel (%p384) target = $region52
        $region51: #{tpu_custom_call.1} parent=31 // pred_region
          %p387 = scmp.lt.s32.totalorder %s29, 2
          %s388 = scalar_select %p387, %s29, 2
          %s389 = scalar_lea.vmem %s5, %s388
        $region52: #{tpu_custom_call.1} parent=31 // pred_fallthru
          _
      $region32: #{tpu_custom_call.1} parent=5 // pred_fallthru
        _
      %p390 = scmp.le.s32.totalorder 1, %s22
      %p391 = scmp.lt.s32.totalorder %s22, 7
      %p392 = pnand %p390, %p391
      %p393 = pneg %p392
      // Predicated region
      $region53: #{tpu_custom_call.1} parent=5 // pred_check
        _
      $region54: #{tpu_custom_call.1} parent=5 // pred_check_branch
        %395 = sbr.rel (%p392) target = $region56
      $region55: #{tpu_custom_call.1} parent=5 // pred_region
        %s396 = ssub.s32 %s22, 1
        %s397 = sand.u32 %s27, 1
        %s398 = scalar_lea.sflag [#allocation7], %s397
        %s399 = sand.u32 %s47, 1
        %s400 = smul.addr %s399, 8
        %s401 = scalar_lea.vmem [#allocation6], %s400
        // Predicated region
        $region57: #{tpu_custom_call.1} parent=55 // pred_check
          %p402 = pneg %p60
        $region58: #{tpu_custom_call.1} parent=55 // pred_check_branch
          %404 = sbr.rel (%p402) target = $region60
        $region59: #{tpu_custom_call.1} parent=55 // pred_region
          %405 = dma.done %s398, 128
        $region60: #{tpu_custom_call.1} parent=55 // pred_fallthru
          _
        // Predicated region
        $region61: #{tpu_custom_call.1} parent=55 // pred_check
          %p406 = pneg %p81
        $region62: #{tpu_custom_call.1} parent=55 // pred_check_branch
          %408 = sbr.rel (%p406) target = $region64
        $region63: #{tpu_custom_call.1} parent=55 // pred_region
          %409 = dma.done [#allocation10], 512
        $region64: #{tpu_custom_call.1} parent=55 // pred_fallthru
          _
        %s410 = sand.u32 %s27, 1
        %s411 = scalar_lea.sflag [#allocation7], %s410
        %s412 = sand.u32 %s94, 1
        %s413 = smul.addr %s412, 128
        %s414 = scalar_lea.vmem [#allocation11], %s413
        // Predicated region
        $region65: #{tpu_custom_call.1} parent=55 // pred_check
          %p415 = pneg %p107
        $region66: #{tpu_custom_call.1} parent=55 // pred_check_branch
          %417 = sbr.rel (%p415) target = $region68
        $region67: #{tpu_custom_call.1} parent=55 // pred_region
          %418 = dma.done %s411, 2048
        $region68: #{tpu_custom_call.1} parent=55 // pred_fallthru
          _
        %s419 = sand.u32 %s27, 1
        %s420 = scalar_lea.sflag [#allocation7], %s419
        %s421 = sand.u32 %s146, 1
        %s422 = smul.addr %s421, 128
        %s423 = scalar_lea.vmem [#allocation12], %s422
        // Predicated region
        $region69: #{tpu_custom_call.1} parent=55 // pred_check
          %p424 = pneg %p159
        $region70: #{tpu_custom_call.1} parent=55 // pred_check_branch
          %426 = sbr.rel (%p424) target = $region72
        $region71: #{tpu_custom_call.1} parent=55 // pred_region
          %427 = dma.done %s420, 2048
        $region72: #{tpu_custom_call.1} parent=55 // pred_fallthru
          _
        %s428 = sand.u32 %s27, 1
        %s429 = scalar_lea.sflag [#allocation7], %s428
        %s430 = sand.u32 %s47, 1
        %s431 = smul.addr %s430, 8
        %s432 = scalar_lea.vmem [#allocation6], %s431
        %p433 = pneg %p60
        %p434 = pneg %p57
        %p435 = pneg %p81
        %p436 = pneg %p78
        %s437 = sand.u32 %s27, 1
        %s438 = scalar_lea.sflag [#allocation7], %s437
        %s439 = sand.u32 %s94, 1
        %s440 = smul.addr %s439, 128
        %s441 = scalar_lea.vmem [#allocation11], %s440
        %p442 = pneg %p107
        %p443 = pneg %p104
        %p444 = scmp.lt.s32.totalorder %s31, 2
        %s445 = scalar_select %p444, %s31, 2
        %s446 = scalar_lea.vmem %s3, %s445
        %p447 = pneg %p133
        %p448 = pneg %p130
        %s449 = sand.u32 %s27, 1
        %s450 = scalar_lea.sflag [#allocation7], %s449
        %s451 = sand.u32 %s146, 1
        %s452 = smul.addr %s451, 128
        %s453 = scalar_lea.vmem [#allocation12], %s452
        %p454 = pneg %p159
        %p455 = pneg %p156
        %p456 = scmp.lt.s32.totalorder %s31, 2
        %s457 = scalar_select %p456, %s31, 2
        %s458 = scalar_lea.vmem %s5, %s457
        %p459 = pneg %p185
        %p460 = pneg %p182
        %p461 = pneg %p206
        %p462 = pneg %p203
        %p463 = pneg %p227
        %p464 = pneg %p224
        %p465 = pneg %p248
        %p466 = pneg %p245
        %p467 = pneg %p274
        %p468 = pneg %p271
        %s469 = sand.u32 %s261, 1
        %s470 = scalar_lea.sflag [#allocation8], %s469
        %s471 = sand.u32 %s261, 1
        %s472 = smul.addr %s471, 2
        %s473 = scalar_lea.vmem [#allocation13], %s472
        %s474 = smul.u32 2, %s32
        %p475 = scmp.lt.s32.totalorder %s31, 2
        %s476 = scalar_select %p475, %s31, 2
        %s477 = scalar_lea.vmem %s3, %s476
        %p478 = scmp.lt.s32.totalorder %s31, 2
        %s479 = scalar_select %p478, %s31, 2
        %s480 = scalar_lea.vmem %s5, %s479
        %p482 = scmp.eq.s32.totalorder %s31, 0
        %p483 = scmp.eq.s32.totalorder %s32, 0
        %p484 = pnand %p482, %p483
        %p485 = pneg %p484
        // Predicated region
        $region73: #{tpu_custom_call.1} parent=55 // pred_check
          _
        $region74: #{tpu_custom_call.1} parent=55 // pred_check_branch
          %487 = sbr.rel (%p484) target = $region76
        $region75: #{tpu_custom_call.1} parent=55 // pred_region
          %v488 = vld [vmem:[#allocation9] sm:$0xff]
          %v489 = vld [vmem:[#allocation9 + $0x8] sm:$0xff]
          %v490 = vld [vmem:[#allocation9 + $0x10] sm:$0xff]
          %v491 = vld [vmem:[#allocation9 + $0x18] sm:$0xff]
          %492 = vst [vmem:[#allocation2] sm:$0xff] %v488
          %493 = vst [vmem:[#allocation2 + $0x8] sm:$0xff] %v489
          %494 = vst [vmem:[#allocation2 + $0x10] sm:$0xff] %v490
          %495 = vst [vmem:[#allocation2 + $0x18] sm:$0xff] %v491
        $region76: #{tpu_custom_call.1} parent=55 // pred_fallthru
          _
        // Predicated region
        $region77: #{tpu_custom_call.1} parent=55 // pred_check
          %p496 = pneg %p483
        $region78: #{tpu_custom_call.1} parent=55 // pred_check_branch
          %498 = sbr.rel (%p496) target = $region80
        $region79: #{tpu_custom_call.1} parent=55 // pred_region
          %499 = vst [vmem:[#allocation4] sm:$0x1] 0.0
          %500 = vst [vmem:[#allocation5] sm:$0x1] 0.0
        $region80: #{tpu_custom_call.1} parent=55 // pred_fallthru
          _
        %s501 = smul.u32 %s32, 16
        %v502 = vld [vmem:[#allocation2] sm:$0xff]
        %v503 = vld [vmem:[#allocation2 + $0x8] sm:$0xff]
        %v504 = vld [vmem:[#allocation2 + $0x10] sm:$0xff]
        %v505 = vld [vmem:[#allocation2 + $0x18] sm:$0xff]
        %s506 = scalar_lea.vmem [#allocation2], %s501
        %v507 = vld [vmem:[%s506] sm:$0xff]
        %v508 = vld [vmem:[%s506 + $0x8] sm:$0xff]
        %v509 = vld [vmem:[%s401] sm:$0xf]
        %v510 = vld [vmem:[%s401 + $0x4] sm:$0xf]
        %v511 = vpack.c.bf16 %v503, %v502
        %v512 = vpack.c.bf16 %v505, %v504
        %v515 = vunpack.c.l.b16 %v509
        %v516 = vunpack.c.l.b16 %v510
        %v517 = vpack.c.b16 %v516, %v515
        %vm518 = vcmask 261120
        %v520 = vsel %vm518, %v517, 0
        %522 = vmatprep.subr.bf16.mxu0 0
        %523 = vmatpush1.bf16.msra.mxu0 0
        %524 = vmatprep.subr.bf16.mxu0 0
        %525 = vmatpush1.bf16.msra.mxu0 0
        %526 = vmatprep.subr.bf16.mxu0 0
        %527 = vmatpush1.bf16.msra.mxu0 0
        %528 = vmatprep.subr.bf16.mxu0 0
        %529 = vmatpush1.bf16.msra.mxu0 0
        %530 = vmatprep.subr.bf16.mxu0 0
        %531 = vmatpush1.bf16.msra.mxu0 0
        %532 = vmatprep.subr.bf16.mxu0 0
        %533 = vmatpush1.bf16.msra.mxu0 0
        %534 = vmatprep.subr.bf16.mxu0 0
        %535 = vmatpush1.bf16.msra.mxu0 %v512
        %536 = vmatprep.subr.bf16.mxu0 0
        %537 = vmatpush1.bf16.msra.mxu0 %v511
        %538 = vmatprep.subr.bf16.mxu0 0
        %539 = vmatpush2.bf16.msra.mxu0 0
        %540 = vmatprep.subr.bf16.mxu0 0
        %541 = vmatpush2.bf16.msra.mxu0 0
        %542 = vmatprep.subr.bf16.mxu0 0
        %543 = vmatpush2.bf16.msra.mxu0 0
        %544 = vmatprep.subr.bf16.mxu0 0
        %545 = vmatpush2.bf16.msra.mxu0 0
        %546 = vmatprep.subr.bf16.mxu0 0
        %547 = vmatpush2.bf16.msra.mxu0 0
        %548 = vmatprep.subr.bf16.mxu0 0
        %549 = vmatpush2.bf16.msra.mxu0 0
        %550 = vmatprep.subr.bf16.mxu0 0
        %551 = vmatpush2.bf16.msra.mxu0 0
        %552 = vmatprep.subr.bf16.mxu0 0
        %553 = vmatpush2.bf16.msra.mxu0 0
        %554 = vmatprep.mubr.bf16.mxu0 0
        %555 = vmatmul.mubr.bf16.gmra.mxu0 %v520
        %v556 = vpop.f32.mrf.mxu0
        %v557 = vadd.f32 %v507, %v556
        %v558 = vpop.f32.mrf.mxu0
        %v559 = vpop.f32.mrf.mxu0
        %v560 = vadd.f32 %v508, %v559
        %v561 = vpop.f32.mrf.mxu0
        %562 = vdwg.mxu0
        %v563 = vld [vmem:[%s414] sm:$0xff]
        %v564 = vld [vmem:[%s414 + $0x8] sm:$0xff]
        %v565 = vld [vmem:[%s414 + $0x10] sm:$0xff]
        %v566 = vld [vmem:[%s414 + $0x18] sm:$0xff]
        %v567 = vld [vmem:[%s414 + $0x20] sm:$0xff]
        %v568 = vld [vmem:[%s414 + $0x28] sm:$0xff]
        %v569 = vld [vmem:[%s414 + $0x30] sm:$0xff]
        %v570 = vld [vmem:[%s414 + $0x38] sm:$0xff]
        %v571 = vld [vmem:[%s414 + $0x40] sm:$0xff]
        %v572 = vld [vmem:[%s414 + $0x48] sm:$0xff]
        %v573 = vld [vmem:[%s414 + $0x50] sm:$0xff]
        %v574 = vld [vmem:[%s414 + $0x58] sm:$0xff]
        %v575 = vld [vmem:[%s414 + $0x60] sm:$0xff]
        %v576 = vld [vmem:[%s414 + $0x68] sm:$0xff]
        %v577 = vld [vmem:[%s414 + $0x70] sm:$0xff]
        %v578 = vld [vmem:[%s414 + $0x78] sm:$0xff]
        %v579 = vld [vmem:[%s477] sm:$0x1]
        %v581 = vlaneseq
        %v582 = vshrl.u32 %v581, 7
        %v583 = vsub.s32 0, %v582
        %v584 = vrot.slane %v579, %v583
        %586 = vmatprep.subr.mxu0 0.0
        %587 = vmatpush1.msra.mxu0 %v578
        %588 = vmatprep.subr.mxu0 0.0
        %589 = vmatpush1.msra.mxu0 %v577
        %590 = vmatprep.subr.mxu0 0.0
        %591 = vmatpush1.msra.mxu0 %v576
        %592 = vmatprep.subr.mxu0 0.0
        %593 = vmatpush1.msra.mxu0 %v575
        %594 = vmatprep.subr.mxu0 0.0
        %595 = vmatpush1.msra.mxu0 %v574
        %596 = vmatprep.subr.mxu0 0.0
        %597 = vmatpush1.msra.mxu0 %v573
        %598 = vmatprep.subr.mxu0 0.0
        %599 = vmatpush1.msra.mxu0 %v572
        %600 = vmatprep.subr.mxu0 0.0
        %601 = vmatpush1.msra.mxu0 %v571
        %602 = vmatprep.subr.mxu0 0.0
        %603 = vmatpush1.msra.mxu0 %v570
        %604 = vmatprep.subr.mxu0 0.0
        %605 = vmatpush1.msra.mxu0 %v569
        %606 = vmatprep.subr.mxu0 0.0
        %607 = vmatpush1.msra.mxu0 %v568
        %608 = vmatprep.subr.mxu0 0.0
        %609 = vmatpush1.msra.mxu0 %v567
        %610 = vmatprep.subr.mxu0 0.0
        %611 = vmatpush1.msra.mxu0 %v566
        %612 = vmatprep.subr.mxu0 0.0
        %613 = vmatpush1.msra.mxu0 %v565
        %614 = vmatprep.subr.mxu0 0.0
        %615 = vmatpush1.msra.mxu0 %v564
        %616 = vmatprep.subr.mxu0 0.0
        %617 = vmatpush1.msra.mxu0 %v563
        %618 = vmatprep.subr.mxu0 0.0
        %619 = vmatpush2.msra.mxu0 0.0
        %620 = vmatprep.subr.mxu0 0.0
        %621 = vmatpush2.msra.mxu0 0.0
        %622 = vmatprep.subr.mxu0 0.0
        %623 = vmatpush2.msra.mxu0 0.0
        %624 = vmatprep.subr.mxu0 0.0
        %625 = vmatpush2.msra.mxu0 0.0
        %626 = vmatprep.subr.mxu0 0.0
        %627 = vmatpush2.msra.mxu0 0.0
        %628 = vmatprep.subr.mxu0 0.0
        %629 = vmatpush2.msra.mxu0 0.0
        %630 = vmatprep.subr.mxu0 0.0
        %631 = vmatpush2.msra.mxu0 0.0
        %632 = vmatprep.subr.mxu0 0.0
        %633 = vmatpush2.msra.mxu0 0.0
        %634 = vmatprep.subr.mxu0 0.0
        %635 = vmatpush2.msra.mxu0 0.0
        %636 = vmatprep.subr.mxu0 0.0
        %637 = vmatpush2.msra.mxu0 0.0
        %638 = vmatprep.subr.mxu0 0.0
        %639 = vmatpush2.msra.mxu0 0.0
        %640 = vmatprep.subr.mxu0 0.0
        %641 = vmatpush2.msra.mxu0 0.0
        %642 = vmatprep.subr.mxu0 0.0
        %643 = vmatpush2.msra.mxu0 0.0
        %644 = vmatprep.subr.mxu0 0.0
        %645 = vmatpush2.msra.mxu0 0.0
        %646 = vmatprep.subr.mxu0 0.0
        %647 = vmatpush2.msra.mxu0 0.0
        %648 = vmatprep.subr.mxu0 0.0
        %649 = vmatpush2.msra.mxu0 0.0
        %650 = vmatprep.mubr.f32.mxu0 0.0
        %651 = vmatmul.mubr.f32.gmra.mxu0 %v557
        %v652 = vpop.f32.mrf.mxu0
        %v653 = vadd.f32 %v584, %v652
        %v654 = vpop.f32.mrf.mxu0
        %655 = vmatprep.mubr.f32.mxu0 0.0
        %656 = vmatmul.mubr.f32.gmra.mxu0 %v560
        %v657 = vpop.f32.mrf.mxu0
        %v658 = vadd.f32 %v584, %v657
        %v659 = vpop.f32.mrf.mxu0
        %660 = vdwg.mxu0
        %v661 = vmax.f32 %v653, 0.0
        %v662 = vmax.f32 %v658, 0.0
        %v663 = vld [vmem:[%s423] sm:$0xff]
        %v664 = vld [vmem:[%s423 + $0x8] sm:$0xff]
        %v665 = vld [vmem:[%s423 + $0x10] sm:$0xff]
        %v666 = vld [vmem:[%s423 + $0x18] sm:$0xff]
        %v667 = vld [vmem:[%s423 + $0x20] sm:$0xff]
        %v668 = vld [vmem:[%s423 + $0x28] sm:$0xff]
        %v669 = vld [vmem:[%s423 + $0x30] sm:$0xff]
        %v670 = vld [vmem:[%s423 + $0x38] sm:$0xff]
        %v671 = vld [vmem:[%s423 + $0x40] sm:$0xff]
        %v672 = vld [vmem:[%s423 + $0x48] sm:$0xff]
        %v673 = vld [vmem:[%s423 + $0x50] sm:$0xff]
        %v674 = vld [vmem:[%s423 + $0x58] sm:$0xff]
        %v675 = vld [vmem:[%s423 + $0x60] sm:$0xff]
        %v676 = vld [vmem:[%s423 + $0x68] sm:$0xff]
        %v677 = vld [vmem:[%s423 + $0x70] sm:$0xff]
        %v678 = vld [vmem:[%s423 + $0x78] sm:$0xff]
        %v679 = vld [vmem:[%s480] sm:$0x1]
        %v681 = vlaneseq
        %v682 = vshrl.u32 %v681, 7
        %v683 = vsub.s32 0, %v682
        %v684 = vrot.slane %v679, %v683
        %686 = vmatprep.subr.mxu0 0.0
        %687 = vmatpush1.msra.mxu0 %v678
        %688 = vmatprep.subr.mxu0 0.0
        %689 = vmatpush1.msra.mxu0 %v677
        %690 = vmatprep.subr.mxu0 0.0
        %691 = vmatpush1.msra.mxu0 %v676
        %692 = vmatprep.subr.mxu0 0.0
        %693 = vmatpush1.msra.mxu0 %v675
        %694 = vmatprep.subr.mxu0 0.0
        %695 = vmatpush1.msra.mxu0 %v674
        %696 = vmatprep.subr.mxu0 0.0
        %697 = vmatpush1.msra.mxu0 %v673
        %698 = vmatprep.subr.mxu0 0.0
        %699 = vmatpush1.msra.mxu0 %v672
        %700 = vmatprep.subr.mxu0 0.0
        %701 = vmatpush1.msra.mxu0 %v671
        %702 = vmatprep.subr.mxu0 0.0
        %703 = vmatpush1.msra.mxu0 %v670
        %704 = vmatprep.subr.mxu0 0.0
        %705 = vmatpush1.msra.mxu0 %v669
        %706 = vmatprep.subr.mxu0 0.0
        %707 = vmatpush1.msra.mxu0 %v668
        %708 = vmatprep.subr.mxu0 0.0
        %709 = vmatpush1.msra.mxu0 %v667
        %710 = vmatprep.subr.mxu0 0.0
        %711 = vmatpush1.msra.mxu0 %v666
        %712 = vmatprep.subr.mxu0 0.0
        %713 = vmatpush1.msra.mxu0 %v665
        %714 = vmatprep.subr.mxu0 0.0
        %715 = vmatpush1.msra.mxu0 %v664
        %716 = vmatprep.subr.mxu0 0.0
        %717 = vmatpush1.msra.mxu0 %v663
        %718 = vmatprep.subr.mxu0 0.0
        %719 = vmatpush2.msra.mxu0 0.0
        %720 = vmatprep.subr.mxu0 0.0
        %721 = vmatpush2.msra.mxu0 0.0
        %722 = vmatprep.subr.mxu0 0.0
        %723 = vmatpush2.msra.mxu0 0.0
        %724 = vmatprep.subr.mxu0 0.0
        %725 = vmatpush2.msra.mxu0 0.0
        %726 = vmatprep.subr.mxu0 0.0
        %727 = vmatpush2.msra.mxu0 0.0
        %728 = vmatprep.subr.mxu0 0.0
        %729 = vmatpush2.msra.mxu0 0.0
        %730 = vmatprep.subr.mxu0 0.0
        %731 = vmatpush2.msra.mxu0 0.0
        %732 = vmatprep.subr.mxu0 0.0
        %733 = vmatpush2.msra.mxu0 0.0
        %734 = vmatprep.subr.mxu0 0.0
        %735 = vmatpush2.msra.mxu0 0.0
        %736 = vmatprep.subr.mxu0 0.0
        %737 = vmatpush2.msra.mxu0 0.0
        %738 = vmatprep.subr.mxu0 0.0
        %739 = vmatpush2.msra.mxu0 0.0
        %740 = vmatprep.subr.mxu0 0.0
        %741 = vmatpush2.msra.mxu0 0.0
        %742 = vmatprep.subr.mxu0 0.0
        %743 = vmatpush2.msra.mxu0 0.0
        %744 = vmatprep.subr.mxu0 0.0
        %745 = vmatpush2.msra.mxu0 0.0
        %746 = vmatprep.subr.mxu0 0.0
        %747 = vmatpush2.msra.mxu0 0.0
        %748 = vmatprep.subr.mxu0 0.0
        %749 = vmatpush2.msra.mxu0 0.0
        %750 = vmatprep.mubr.f32.mxu0 0.0
        %751 = vmatmul.mubr.f32.gmra.mxu0 %v661
        %v752 = vpop.f32.mrf.mxu0
        %v753 = vadd.f32 %v684, %v752
        %v754 = vpop.f32.mrf.mxu0
        %755 = vmatprep.mubr.f32.mxu0 0.0
        %756 = vmatmul.mubr.f32.gmra.mxu0 %v662
        %v757 = vpop.f32.mrf.mxu0
        %v758 = vadd.f32 %v684, %v757
        %v759 = vpop.f32.mrf.mxu0
        %760 = vdwg.mxu0
        %v761 = vmax.f32 %v753, 0.0
        %v762 = vmax.f32 %v758, 0.0
        %v763 = vlaneseq
        %v764 = vshrl.u32 %v763, 7
        %v765 = vadd.s32 %v764, 8
        %v766 = vstv %s501
        %v767 = vadd.s32 %v764, %v766
        %v768 = vadd.s32 %v765, %v766
        %vm769 = vcmp.lt.s32.totalorder %v767, 24
        %vm770 = vcmp.lt.s32.totalorder %v768, 24
        %v771 = vsel %vm769, %v761, 0.0
        %v772 = vsel %vm770, %v762, 0.0
        %v773 = vld [vmem:[#allocation4] sm:$0x1]
        %v774 = vadd.f32 %v771, %v772
        %v775 = vrot.slane %v774, 4
        %v776 = vadd.f32 %v774, %v775
        %v777 = vrot.slane %v776, 2
        %v778 = vadd.f32 %v776, %v777
        %v779 = vrot.slane %v778, 1
        %v780 = vadd.f32 %v778, %v779
        %v781 = vadd.f32 %v773, %v780
        %782 = vst [vmem:[#allocation4] sm:$0x1] %v781
        %v783 = vld [vmem:[#allocation5] sm:$0x1]
        %v784 = vmul.f32 %v771, %v771
        %v785 = vmul.f32 %v772, %v772
        %v786 = vadd.f32 %v784, %v785
        %v787 = vrot.slane %v786, 4
        %v788 = vadd.f32 %v786, %v787
        %v789 = vrot.slane %v788, 2
        %v790 = vadd.f32 %v788, %v789
        %v791 = vrot.slane %v790, 1
        %v792 = vadd.f32 %v790, %v791
        %v793 = vadd.f32 %v783, %v792
        %794 = vst [vmem:[#allocation5] sm:$0x1] %v793
        %s795 = scalar_lea.vmem [#allocation3], %s501
        %796 = vst [vmem:[%s795] sm:$0xff] %v771
        %797 = vst [vmem:[%s795 + $0x8] sm:$0xff] %v772
        %p798 = scmp.eq.s32.totalorder %s32, 1
        // Predicated region
        $region81: #{tpu_custom_call.1} parent=55 // pred_check
          %p799 = pneg %p798
        $region82: #{tpu_custom_call.1} parent=55 // pred_check_branch
          %801 = sbr.rel (%p799) target = $region84
        $region83: #{tpu_custom_call.1} parent=55 // pred_region
          %v802 = vld [vmem:[#allocation4] sm:$0x1]
          %v803 = vmul.f32 %v802, 0.041666668
          %v804 = vld [vmem:[#allocation5] sm:$0x1]
          %v805 = vmul.f32 %v804, 0.041666668
          %v806 = vmul.f32 %v803, %v803
          %v807 = vsub.f32 %v805, %v806
          %v808 = vmax.f32 %v807, 0.0
          %v809 = vadd.f32 %v808, 1e-05
          %v810 = vrsqrt.pop %v809
          %v811 = vld [vmem:[%s6] sm:$0x1]
          %v812 = vmul.f32 %v811, %v810
          %v813 = vld [vmem:[%s7] sm:$0x1]
          %v814 = vmul.f32 %v803, %v812
          %v815 = vsub.f32 %v813, %v814
          %v816 = vld [vmem:[#allocation3] sm:$0xff]
          %v817 = vld [vmem:[#allocation3 + $0x8] sm:$0xff]
          %v818 = vld [vmem:[#allocation3 + $0x10] sm:$0xff]
          %v819 = vld [vmem:[#allocation3 + $0x18] sm:$0xff]
          %v821 = vlaneseq
          %v822 = vshrl.u32 %v821, 7
          %v823 = vsub.s32 0, %v822
          %v824 = vrot.slane %v812, %v823
          %v826 = vmul.f32 %v816, %v824
          %v827 = vmul.f32 %v817, %v824
          %v828 = vmul.f32 %v818, %v824
          %v829 = vmul.f32 %v819, %v824
          %v831 = vlaneseq
          %v832 = vshrl.u32 %v831, 7
          %v833 = vsub.s32 0, %v832
          %v834 = vrot.slane %v815, %v833
          %v836 = vadd.f32 %v826, %v834
          %v837 = vadd.f32 %v827, %v834
          %v838 = vadd.f32 %v828, %v834
          %v839 = vadd.f32 %v829, %v834
          %840 = vst [vmem:[#allocation2] sm:$0xff] %v836
          %841 = vst [vmem:[#allocation2 + $0x8] sm:$0xff] %v837
          %842 = vst [vmem:[#allocation2 + $0x10] sm:$0xff] %v838
          %843 = vst [vmem:[#allocation2 + $0x18] sm:$0xff] %v839
          %v844 = vld [vmem:[%s8] sm:$0x3]
          %v846 = vsel %vm518, %v844, 0
          %848 = vmatprep.subr.mxu0 0.0
          %849 = vmatpush1.msra.mxu0 0.0
          %850 = vmatprep.subr.mxu0 0.0
          %851 = vmatpush1.msra.mxu0 0.0
          %852 = vmatprep.subr.mxu0 0.0
          %853 = vmatpush1.msra.mxu0 0.0
          %854 = vmatprep.subr.mxu0 0.0
          %855 = vmatpush1.msra.mxu0 0.0
          %856 = vmatprep.subr.mxu0 0.0
          %857 = vmatpush1.msra.mxu0 0.0
          %858 = vmatprep.subr.mxu0 0.0
          %859 = vmatpush1.msra.mxu0 0.0
          %860 = vmatprep.subr.mxu0 0.0
          %861 = vmatpush1.msra.mxu0 0.0
          %862 = vmatprep.subr.mxu0 0.0
          %863 = vmatpush1.msra.mxu0 0.0
          %864 = vmatprep.subr.mxu0 0.0
          %865 = vmatpush1.msra.mxu0 0.0
          %866 = vmatprep.subr.mxu0 0.0
          %867 = vmatpush1.msra.mxu0 0.0
          %868 = vmatprep.subr.mxu0 0.0
          %869 = vmatpush1.msra.mxu0 0.0
          %870 = vmatprep.subr.mxu0 0.0
          %871 = vmatpush1.msra.mxu0 0.0
          %872 = vmatprep.subr.mxu0 0.0
          %873 = vmatpush1.msra.mxu0 %v839
          %874 = vmatprep.subr.mxu0 0.0
          %875 = vmatpush1.msra.mxu0 %v838
          %876 = vmatprep.subr.mxu0 0.0
          %877 = vmatpush1.msra.mxu0 %v837
          %878 = vmatprep.subr.mxu0 0.0
          %879 = vmatpush1.msra.mxu0 %v836
          %880 = vmatprep.subr.mxu0 0.0
          %881 = vmatpush2.msra.mxu0 0.0
          %882 = vmatprep.subr.mxu0 0.0
          %883 = vmatpush2.msra.mxu0 0.0
          %884 = vmatprep.subr.mxu0 0.0
          %885 = vmatpush2.msra.mxu0 0.0
          %886 = vmatprep.subr.mxu0 0.0
          %887 = vmatpush2.msra.mxu0 0.0
          %888 = vmatprep.subr.mxu0 0.0
          %889 = vmatpush2.msra.mxu0 0.0
          %890 = vmatprep.subr.mxu0 0.0
          %891 = vmatpush2.msra.mxu0 0.0
          %892 = vmatprep.subr.mxu0 0.0
          %893 = vmatpush2.msra.mxu0 0.0
          %894 = vmatprep.subr.mxu0 0.0
          %895 = vmatpush2.msra.mxu0 0.0
          %896 = vmatprep.subr.mxu0 0.0
          %897 = vmatpush2.msra.mxu0 0.0
          %898 = vmatprep.subr.mxu0 0.0
          %899 = vmatpush2.msra.mxu0 0.0
          %900 = vmatprep.subr.mxu0 0.0
          %901 = vmatpush2.msra.mxu0 0.0
          %902 = vmatprep.subr.mxu0 0.0
          %903 = vmatpush2.msra.mxu0 0.0
          %904 = vmatprep.subr.mxu0 0.0
          %905 = vmatpush2.msra.mxu0 0.0
          %906 = vmatprep.subr.mxu0 0.0
          %907 = vmatpush2.msra.mxu0 0.0
          %908 = vmatprep.subr.mxu0 0.0
          %909 = vmatpush2.msra.mxu0 0.0
          %910 = vmatprep.subr.mxu0 0.0
          %911 = vmatpush2.msra.mxu0 0.0
          %912 = vmatprep.mubr.f32.mxu0 0.0
          %913 = vmatmul.mubr.f32.gmra.mxu0 %v846
          %v914 = vpop.f32.mrf.mxu0
          %v915 = vadd.f32 0.0, %v914
          %v916 = vpop.f32.mrf.mxu0
          %917 = vdwg.mxu0
          %918 = vst [vmem:[%s473] sm:$0x3] %v915
        $region84: #{tpu_custom_call.1} parent=55 // pred_fallthru
          _
        %s919 = sand.u32 %s261, 1
        %s920 = scalar_lea.sflag [#allocation8], %s919
        %s921 = sand.u32 %s261, 1
        %s922 = smul.addr %s921, 2
        %s923 = scalar_lea.vmem [#allocation13], %s922
        // Predicated region
        $region85: #{tpu_custom_call.1} parent=55 // pred_check
          %p924 = pneg %p271
        $region86: #{tpu_custom_call.1} parent=55 // pred_check_branch
          %926 = sbr.rel (%p924) target = $region88
        $region87: #{tpu_custom_call.1} parent=55 // pred_region
          %s928 = ssub.s32 32, 32
          %929 = vsyncadd %s920, %s928
          %s930 = smul.addr %s31, 32
          %s931 = scalar_lea.hbm %s9, %s930
          %s933 = sshll.u32 %s923, 4
          %s934 = int_to_ptr.vmem [resolvable:$true] %s933
          %936 = dma.vmem_to_hbm [thread:$0]  %s934, 32, %s931, %s920
        $region88: #{tpu_custom_call.1} parent=55 // pred_fallthru
          _
      $region56: #{tpu_custom_call.1} parent=5 // pred_fallthru
        _
      %p937 = scmp.le.s32.totalorder 2, %s22
      // Predicated region
      $region89: #{tpu_custom_call.1} parent=5 // pred_check
        %p938 = pneg %p937
      $region90: #{tpu_custom_call.1} parent=5 // pred_check_branch
        %940 = sbr.rel (%p938) target = $region92
      $region91: #{tpu_custom_call.1} parent=5 // pred_region
        %s941 = ssub.s32 %s22, 2
        // Predicated region
        $region93: #{tpu_custom_call.1} parent=91 // pred_check
          %p942 = pneg %p277
        $region94: #{tpu_custom_call.1} parent=91 // pred_check_branch
          %944 = sbr.rel (%p942) target = $region96
        $region95: #{tpu_custom_call.1} parent=91 // pred_region
          %s945 = sand.u32 %s262, 1
          %s946 = scalar_lea.sflag [#allocation8], %s945
          %s947 = sand.u32 %s262, 1
          %s948 = smul.addr %s947, 2
          %s949 = scalar_lea.vmem [#allocation13], %s948
          %950 = dma.done %s946, 32
        $region96: #{tpu_custom_call.1} parent=91 // pred_fallthru
          _
      $region92: #{tpu_custom_call.1} parent=5 // pred_fallthru
        _
    $region6: #{tpu_custom_call.1} parent=1 // loop_footer
      %s26 = sadd.s32 1, %s22
    $region7: #{tpu_custom_call.1} parent=1 // loop_footer_branch
      %21 = sbr.rel target = $region3
    $region8: #{tpu_custom_call.1} parent=1 // loop_exit
      _
    %951 = vsyncpa [#allocation7], 1
    %s952 = scalar_lea.sflag [#allocation7], 1
    %953 = vsyncpa %s952, 1
    %954 = vsyncpa [#allocation10], 1
    %955 = vsyncpa [#allocation8], 1
    %s956 = scalar_lea.sflag [#allocation8], 1
    %957 = vsyncpa %s956, 1

</llo_original>
